<compile_context>
chip_gen: v7x
topology: tpu7x:2x2x1
jax: 0.10.0
libtpu: 0.0.40
codegen_flags: <defaults>
</compile_context>

<pallas_src>
from functools import partial

import jax
import jax.numpy as jnp
from jax.experimental import pallas as pl
from jax.experimental.pallas import tpu as pltpu

# ----------------------------- config ---------------------------------------
OBS_SIZE = 16
NUM_ACTIONS = 8
HIDDEN_SIZE = 32
ITERS = 3
BATCH = 4

A = NUM_ACTIONS
H = HIDDEN_SIZE
AH = A + H            # 40: width of the fused [inp | hid] activation
AO = A + 1            # 9:  width of the fused [next_inp | conf] output
OUT_W = 2 * A + ITERS  # 19: packed output [logits | probs | softconf]

# packed-parameter slab layout (rows x 128 lanes, everything starts at lane 0)
R_W_OBS = 0                       # rows  0:16  cols 0:40 -> [w_obs2i | w_obs2h]
R_W_IH = R_W_OBS + OBS_SIZE       # rows 16:56  cols 0:32 -> [w_i2h ; w_h2h]
R_W_OUT = R_W_IH + AH             # rows 56:88  cols 0:9  -> [w_h2i | w_h2c]
R_B_OBS = R_W_OUT + H             # row  88     cols 0:40 -> [b_obs2i | b_obs2h]
R_B_IH = R_B_OBS + 1              # row  89     cols 0:32 -> b_i2h + b_h2h
R_B_OUT = R_B_IH + 1              # row  90     cols 0:9  -> [b_h2i | b_h2c]
PROWS = 96                        # padded to a multiple of 8 sublanes
PCOLS = 128                       # one lane-dense tile

MAX_TILE = 512                    # batch-tile upper bound (KB-scale VMEM use)
SPLIT_THRESHOLD = 128             # batches >= this get >=2 tiles (v7x megacore)


# ----------------------------- kernel ---------------------------------------
def rnn_agent_kernel(obs_ref, p_ref, out_ref):
    obs = obs_ref[...]                                          # (TB, 16)

    # Hoisted weight/bias loads (static slices of the resident packed slab).
    w_obs = p_ref[R_W_OBS:R_W_OBS + OBS_SIZE, 0:AH]             # (16, 40)
    w_i2h = p_ref[R_W_IH:R_W_IH + A, 0:H]                       # (8, 32)
    w_h2h = p_ref[R_W_IH + A:R_W_IH + AH, 0:H]                  # (32, 32)
    w_out = p_ref[R_W_OUT:R_W_OUT + H, 0:AO]                    # (32, 9)
    b_obs = p_ref[R_B_OBS:R_B_OBS + 1, 0:AH]                    # (1, 40)
    b_ih = p_ref[R_B_IH:R_B_IH + 1, 0:H]                        # (1, 32)
    b_out = p_ref[R_B_OUT:R_B_OUT + 1, 0:AO]                    # (1, 9)

    # [inp | hid] via one fused matmul (obs2i and obs2h together).
    x0 = jnp.dot(obs, w_obs, preferred_element_type=jnp.float32) + b_obs  # (TB, 40)
    inp = x0[:, 0:A]                                            # (TB, 8)
    hid = x0[:, A:AH]                                           # (TB, 32)

    logits_list = []   # inputs appended BEFORE each cell step == torch stack[:-1]
    confs = []         # per-iteration confidences, (TB, 1) each
    for _ in range(ITERS):
        logits_list.append(inp)
        # hidden' = tanh(i2h(inp) + h2h(hid)); two small dots — MXU slack is
        # huge at these K, and this avoids a per-iteration lane-axis concat.
        hp = jnp.tanh(
            jnp.dot(inp, w_i2h, preferred_element_type=jnp.float32)
            + jnp.dot(hid, w_h2h, preferred_element_type=jnp.float32)
            + b_ih
        )                                                       # (TB, 32)
        # [next_inp | confidence] via one fused matmul.
        out = jnp.dot(hp, w_out, preferred_element_type=jnp.float32) + b_out
        confs.append(out[:, A:AO])
        inp = out[:, 0:A]
        hid = hp

    # Confidence softmax done once on the stacked (TB, ITERS) array.
    conf = jnp.concatenate(confs, axis=1)                       # (TB, 3)
    m = jnp.max(conf, axis=1, keepdims=True)
    e = jnp.exp(conf - m)
    inv = pl.reciprocal(jnp.sum(e, axis=1, keepdims=True), approx=True)  # EUP
    weights = e * inv                                           # (TB, 3)

    # final logits = sum_i soft_conf_i * logits_i
    final = weights[:, 0:1] * logits_list[0]
    for i in range(1, ITERS):
        final = final + weights[:, i:i + 1] * logits_list[i]    # (TB, 8)

    # Categorical probs = softmax(logits, -1); exact normalization so rows
    # sum to 1 (negligible cost at these sizes).
    mrow = jnp.max(final, axis=-1, keepdims=True)
    ef = jnp.exp(final - mrow)
    probs = ef / jnp.sum(ef, axis=-1, keepdims=True)            # (TB, 8)

    # Single lane-packed store: [logits | probs | softconf] -> one output DMA.
    out_ref[...] = jnp.concatenate([final, probs, weights], axis=1)  # (TB, 19)


# ----------------------------- wrapper ---------------------------------------
def make_params(key):
    """Deterministic synthetic parameters (Linear weights stored as (in, out))."""
    ks = jax.random.split(key, 12)
    scale = 0.1
    return {
        "w_obs2i": jax.random.normal(ks[0], (OBS_SIZE, NUM_ACTIONS), jnp.float32) * scale,
        "b_obs2i": jax.random.normal(ks[1], (1, NUM_ACTIONS), jnp.float32) * scale,
        "w_obs2h": jax.random.normal(ks[2], (OBS_SIZE, HIDDEN_SIZE), jnp.float32) * scale,
        "b_obs2h": jax.random.normal(ks[3], (1, HIDDEN_SIZE), jnp.float32) * scale,
        "w_i2h": jax.random.normal(ks[4], (NUM_ACTIONS, HIDDEN_SIZE), jnp.float32) * scale,
        "b_i2h": jax.random.normal(ks[5], (1, HIDDEN_SIZE), jnp.float32) * scale,
        "w_h2h": jax.random.normal(ks[6], (HIDDEN_SIZE, HIDDEN_SIZE), jnp.float32) * scale,
        "b_h2h": jax.random.normal(ks[7], (1, HIDDEN_SIZE), jnp.float32) * scale,
        "w_h2i": jax.random.normal(ks[8], (HIDDEN_SIZE, NUM_ACTIONS), jnp.float32) * scale,
        "b_h2i": jax.random.normal(ks[9], (1, NUM_ACTIONS), jnp.float32) * scale,
        "w_h2c": jax.random.normal(ks[10], (HIDDEN_SIZE, 1), jnp.float32) * scale,
        "b_h2c": jax.random.normal(ks[11], (1, 1), jnp.float32) * scale,
    }


def pack_params(p):
    """Pack all weights/biases (matmul fusions pre-applied) into one (96, 128)
    f32 slab -> a single, grid-resident parameter DMA per kernel invocation."""
    slab = jnp.zeros((PROWS, PCOLS), jnp.float32)
    w_obs = jnp.concatenate([p["w_obs2i"], p["w_obs2h"]], axis=1)      # (16, 40)
    w_ih = jnp.concatenate([p["w_i2h"], p["w_h2h"]], axis=0)           # (40, 32)
    w_out = jnp.concatenate([p["w_h2i"], p["w_h2c"]], axis=1)          # (32, 9)
    b_obs = jnp.concatenate([p["b_obs2i"], p["b_obs2h"]], axis=1)      # (1, 40)
    b_ih = p["b_i2h"] + p["b_h2h"]                                     # (1, 32)
    b_out = jnp.concatenate([p["b_h2i"], p["b_h2c"]], axis=1)          # (1, 9)
    slab = slab.at[R_W_OBS:R_W_OBS + OBS_SIZE, 0:AH].set(w_obs)
    slab = slab.at[R_W_IH:R_W_IH + AH, 0:H].set(w_ih)
    slab = slab.at[R_W_OUT:R_W_OUT + H, 0:AO].set(w_out)
    slab = slab.at[R_B_OBS:R_B_OBS + 1, 0:AH].set(b_obs)
    slab = slab.at[R_B_IH:R_B_IH + 1, 0:H].set(b_ih)
    slab = slab.at[R_B_OUT:R_B_OUT + 1, 0:AO].set(b_out)
    return slab


def _round_up(x, m):
    return ((x + m - 1) // m) * m


def _choose_tile(B):
    """Pick (padded batch, batch tile) so the grid has as few steps as possible
    while still giving >=2 steps for large batches (v7x dual-TC sharding)."""
    b8 = _round_up(B, 8)                       # f32 sublane multiple
    if b8 > MAX_TILE:
        return _round_up(b8, MAX_TILE), MAX_TILE          # grid >= 2 always
    if b8 >= SPLIT_THRESHOLD:
        tb = _round_up(pl.cdiv(b8, 2), 8)                  # 2 tiles -> 2 TCs on v7x
        return 2 * tb, tb
    return b8, b8                                           # tiny batch: 1 step


@jax.jit
def rnn_agent_forward(observation, param_slab):
    """Returns (logits, probs, soft_confs_flat).

    `logits` are the Categorical distribution parameters; `probs` is the
    materialized distribution (exact softmax over actions, computed in-kernel);
    `soft_confs_flat` matches torch's `soft_confs.flatten()` (iters-major).
    """
    B = observation.shape[0]
    B_pad, TB = _choose_tile(B)
    if B_pad != B:
        observation = jnp.pad(observation, ((0, B_pad - B), (0, 0)))
    grid = (B_pad // TB,)

    packed = pl.pallas_call(
        rnn_agent_kernel,
        out_shape=jax.ShapeDtypeStruct((B_pad, OUT_W), jnp.float32),
        grid=grid,
        in_specs=[
            pl.BlockSpec((TB, OBS_SIZE), lambda i: (i, 0)),
            pl.BlockSpec((PROWS, PCOLS), lambda i: (0, 0)),   # slab stays resident
        ],
        out_specs=pl.BlockSpec((TB, OUT_W), lambda i: (i, 0)),
        compiler_params=pltpu.CompilerParams(
            dimension_semantics=("parallel",),
        ),
    )(observation, param_slab)

    logits = packed[:B, 0:A]
    probs = packed[:B, A:2 * A]
    softconf_bt = packed[:B, 2 * A:2 * A + ITERS]
    # torch: soft_confs has shape (iters, B, 1); .flatten() is iters-major.
    soft_confs_flat = softconf_bt.T.reshape(-1)
    return logits, probs, soft_confs_flat


# ----------------------------- pure-JAX reference -----------------------------
def rnn_agent_reference(observation, params):
    def linear(x, w, b):
        return x @ w + b

    inp = linear(observation, params["w_obs2i"], params["b_obs2i"])
    hid = linear(observation, params["w_obs2h"], params["b_obs2h"])
    logits = [inp]
    confs = []
    for _ in range(ITERS):
        hp = jnp.tanh(
            linear(inp, params["w_i2h"], params["b_i2h"])
            + linear(hid, params["w_h2h"], params["b_h2h"])
        )
        inp = linear(hp, params["w_h2i"], params["b_h2i"])
        confs.append(linear(hp, params["w_h2c"], params["b_h2c"]))
        hid = hp
        logits.append(inp)
    logits = jnp.stack(logits)[:-1]              # (iters, B, A)
    confs = jnp.stack(confs)                     # (iters, B, 1)
    soft = jax.nn.softmax(confs, axis=0)
    final = jnp.sum(soft * logits, axis=0)       # (B, A)
    return final, soft.reshape(-1)


# ----------------------------- main -------------------------------------------
if __name__ == "__main__":
    key = jax.random.PRNGKey(0)
    k_obs, k_params = jax.random.split(key)
    observation = jax.random.normal(k_obs, (BATCH, OBS_SIZE), jnp.float32)
    params = make_params(k_params)
    param_slab = pack_params(params)

    logits, probs, soft_confs_flat = rnn_agent_forward(observation, param_slab)
    jax.block_until_ready((logits, probs, soft_confs_flat))

    ref_logits, ref_soft = rnn_agent_reference(observation, params)
    ref_probs = jax.nn.softmax(ref_logits, axis=-1)

    # Confidence softmax uses the EUP approximate reciprocal; probs use exact
    # normalization.  Tolerances absorb the approx path.
    assert jnp.allclose(logits, ref_logits, rtol=2e-2, atol=2e-3), "logits mismatch"
    assert jnp.allclose(soft_confs_flat, ref_soft, rtol=2e-2, atol=2e-3), "soft_confs mismatch"
    assert jnp.allclose(probs, ref_probs, rtol=2e-2, atol=2e-3), "probs mismatch"

    print("KERNEL_OK")
</pallas_src>

<mosaic_0001>
module attributes {stable_mosaic.version = 11 : i64} {
  func.func @rnn_agent_kernel(%arg0: i32, %arg1: memref<8x16xf32, #tpu.memory_space<vmem>>, %arg2: memref<96x128xf32, #tpu.memory_space<vmem>>, %arg3: memref<8x19xf32, #tpu.memory_space<vmem>>) attributes {dimension_semantics = [#tpu.dimension_semantics<parallel>], iteration_bounds = array<i64: 1>, scalar_prefetch = 0 : i64, scratch_operands = 0 : i64, tpu.core_type = #tpu.core_type<tc>, window_params = [{transform_indices = @transform_0, window_bounds = array<i64: 8, 16>}, {pipeline_mode = #tpu.pipeline_mode<synchronous>, transform_indices = @transform_1, window_bounds = array<i64: 96, 128>}, {transform_indices = @transform_2, window_bounds = array<i64: 8, 19>}]} {
    %c0 = arith.constant 0 : index
    %c0_0 = arith.constant 0 : index
    %0 = vector.load %arg1[%c0, %c0_0] : memref<8x16xf32, #tpu.memory_space<vmem>>, vector<8x16xf32>
    %c0_1 = arith.constant 0 : index
    %c0_2 = arith.constant 0 : index
    %1 = vector.load %arg2[%c0_1, %c0_2] : memref<96x128xf32, #tpu.memory_space<vmem>>, vector<16x40xf32>
    %c16 = arith.constant 16 : index
    %c0_3 = arith.constant 0 : index
    %2 = vector.load %arg2[%c16, %c0_3] : memref<96x128xf32, #tpu.memory_space<vmem>>, vector<8x32xf32>
    %c24 = arith.constant 24 : index
    %c0_4 = arith.constant 0 : index
    %3 = vector.load %arg2[%c24, %c0_4] : memref<96x128xf32, #tpu.memory_space<vmem>>, vector<32x32xf32>
    %c56 = arith.constant 56 : index
    %c0_5 = arith.constant 0 : index
    %4 = vector.load %arg2[%c56, %c0_5] : memref<96x128xf32, #tpu.memory_space<vmem>>, vector<32x9xf32>
    %c88 = arith.constant 88 : index
    %c0_6 = arith.constant 0 : index
    %5 = vector.load %arg2[%c88, %c0_6] : memref<96x128xf32, #tpu.memory_space<vmem>>, vector<1x40xf32>
    %c89 = arith.constant 89 : index
    %c0_7 = arith.constant 0 : index
    %6 = vector.load %arg2[%c89, %c0_7] : memref<96x128xf32, #tpu.memory_space<vmem>>, vector<1x32xf32>
    %c90 = arith.constant 90 : index
    %c0_8 = arith.constant 0 : index
    %7 = vector.load %arg2[%c90, %c0_8] : memref<96x128xf32, #tpu.memory_space<vmem>>, vector<1x9xf32>
    %cst = arith.constant dense<0.000000e+00> : vector<8x40xf32>
    %8 = tpu.matmul %0, %1, %cst {dimension_numbers = #tpu.dot_dimension_numbers<[1], [0], [0], [1], [0, 0, 1, 1], [], []>} : vector<8x16xf32>, vector<16x40xf32>, vector<8x40xf32> -> vector<8x40xf32>
    %9 = vector.broadcast %5 : vector<1x40xf32> to vector<8x40xf32>
    %10 = arith.addf %8, %9 : vector<8x40xf32>
    %11 = vector.extract_strided_slice %10 {offsets = [0, 0], sizes = [8, 8], strides = [1, 1]} : vector<8x40xf32> to vector<8x8xf32>
    %12 = vector.extract_strided_slice %10 {offsets = [0, 8], sizes = [8, 32], strides = [1, 1]} : vector<8x40xf32> to vector<8x32xf32>
    %cst_9 = arith.constant dense<0.000000e+00> : vector<8x32xf32>
    %13 = tpu.matmul %11, %2, %cst_9 {dimension_numbers = #tpu.dot_dimension_numbers<[1], [0], [0], [1], [0, 0, 1, 1], [], []>} : vector<8x8xf32>, vector<8x32xf32>, vector<8x32xf32> -> vector<8x32xf32>
    %cst_10 = arith.constant dense<0.000000e+00> : vector<8x32xf32>
    %14 = tpu.matmul %12, %3, %cst_10 {dimension_numbers = #tpu.dot_dimension_numbers<[1], [0], [0], [1], [0, 0, 1, 1], [], []>} : vector<8x32xf32>, vector<32x32xf32>, vector<8x32xf32> -> vector<8x32xf32>
    %15 = arith.addf %13, %14 : vector<8x32xf32>
    %16 = vector.broadcast %6 : vector<1x32xf32> to vector<8x32xf32>
    %17 = arith.addf %15, %16 : vector<8x32xf32>
    %18 = math.tanh %17 : vector<8x32xf32>
    %cst_11 = arith.constant dense<0.000000e+00> : vector<8x9xf32>
    %19 = tpu.matmul %18, %4, %cst_11 {dimension_numbers = #tpu.dot_dimension_numbers<[1], [0], [0], [1], [0, 0, 1, 1], [], []>} : vector<8x32xf32>, vector<32x9xf32>, vector<8x9xf32> -> vector<8x9xf32>
    %20 = vector.broadcast %7 : vector<1x9xf32> to vector<8x9xf32>
    %21 = arith.addf %19, %20 : vector<8x9xf32>
    %22 = vector.extract_strided_slice %21 {offsets = [0, 8], sizes = [8, 1], strides = [1, 1]} : vector<8x9xf32> to vector<8x1xf32>
    %23 = vector.extract_strided_slice %21 {offsets = [0, 0], sizes = [8, 8], strides = [1, 1]} : vector<8x9xf32> to vector<8x8xf32>
    %cst_12 = arith.constant dense<0.000000e+00> : vector<8x32xf32>
    %24 = tpu.matmul %23, %2, %cst_12 {dimension_numbers = #tpu.dot_dimension_numbers<[1], [0], [0], [1], [0, 0, 1, 1], [], []>} : vector<8x8xf32>, vector<8x32xf32>, vector<8x32xf32> -> vector<8x32xf32>
    %cst_13 = arith.constant dense<0.000000e+00> : vector<8x32xf32>
    %25 = tpu.matmul %18, %3, %cst_13 {dimension_numbers = #tpu.dot_dimension_numbers<[1], [0], [0], [1], [0, 0, 1, 1], [], []>} : vector<8x32xf32>, vector<32x32xf32>, vector<8x32xf32> -> vector<8x32xf32>
    %26 = arith.addf %24, %25 : vector<8x32xf32>
    %27 = vector.broadcast %6 : vector<1x32xf32> to vector<8x32xf32>
    %28 = arith.addf %26, %27 : vector<8x32xf32>
    %29 = math.tanh %28 : vector<8x32xf32>
    %cst_14 = arith.constant dense<0.000000e+00> : vector<8x9xf32>
    %30 = tpu.matmul %29, %4, %cst_14 {dimension_numbers = #tpu.dot_dimension_numbers<[1], [0], [0], [1], [0, 0, 1, 1], [], []>} : vector<8x32xf32>, vector<32x9xf32>, vector<8x9xf32> -> vector<8x9xf32>
    %31 = vector.broadcast %7 : vector<1x9xf32> to vector<8x9xf32>
    %32 = arith.addf %30, %31 : vector<8x9xf32>
    %33 = vector.extract_strided_slice %32 {offsets = [0, 8], sizes = [8, 1], strides = [1, 1]} : vector<8x9xf32> to vector<8x1xf32>
    %34 = vector.extract_strided_slice %32 {offsets = [0, 0], sizes = [8, 8], strides = [1, 1]} : vector<8x9xf32> to vector<8x8xf32>
    %cst_15 = arith.constant dense<0.000000e+00> : vector<8x32xf32>
    %35 = tpu.matmul %34, %2, %cst_15 {dimension_numbers = #tpu.dot_dimension_numbers<[1], [0], [0], [1], [0, 0, 1, 1], [], []>} : vector<8x8xf32>, vector<8x32xf32>, vector<8x32xf32> -> vector<8x32xf32>
    %cst_16 = arith.constant dense<0.000000e+00> : vector<8x32xf32>
    %36 = tpu.matmul %29, %3, %cst_16 {dimension_numbers = #tpu.dot_dimension_numbers<[1], [0], [0], [1], [0, 0, 1, 1], [], []>} : vector<8x32xf32>, vector<32x32xf32>, vector<8x32xf32> -> vector<8x32xf32>
    %37 = arith.addf %35, %36 : vector<8x32xf32>
    %38 = vector.broadcast %6 : vector<1x32xf32> to vector<8x32xf32>
    %39 = arith.addf %37, %38 : vector<8x32xf32>
    %40 = math.tanh %39 : vector<8x32xf32>
    %cst_17 = arith.constant dense<0.000000e+00> : vector<8x9xf32>
    %41 = tpu.matmul %40, %4, %cst_17 {dimension_numbers = #tpu.dot_dimension_numbers<[1], [0], [0], [1], [0, 0, 1, 1], [], []>} : vector<8x32xf32>, vector<32x9xf32>, vector<8x9xf32> -> vector<8x9xf32>
    %42 = vector.broadcast %7 : vector<1x9xf32> to vector<8x9xf32>
    %43 = arith.addf %41, %42 : vector<8x9xf32>
    %44 = vector.extract_strided_slice %43 {offsets = [0, 8], sizes = [8, 1], strides = [1, 1]} : vector<8x9xf32> to vector<8x1xf32>
    %45 = tpu.concatenate %22, %33, %44 in 1 : vector<8x1xf32>, vector<8x1xf32>, vector<8x1xf32> -> vector<8x3xf32>
    %cst_18 = arith.constant dense<0xFF800000> : vector<8xf32>
    %46 = vector.multi_reduction <maximumf>, %45, %cst_18 [1] : vector<8x3xf32> to vector<8xf32>
    %47 = vector.shape_cast %46 : vector<8xf32> to vector<8x1xf32>
    %48 = vector.broadcast %47 : vector<8x1xf32> to vector<8x3xf32>
    %49 = arith.subf %45, %48 : vector<8x3xf32>
    %50 = math.exp %49 : vector<8x3xf32>
    %cst_19 = arith.constant dense<0.000000e+00> : vector<8xf32>
    %51 = vector.multi_reduction <add>, %50, %cst_19 [1] : vector<8x3xf32> to vector<8xf32>
    %52 = vector.shape_cast %51 : vector<8xf32> to vector<8x1xf32>
    %53 = tpu.reciprocal %52 {approx = true} : vector<8x1xf32> -> vector<8x1xf32>
    %54 = vector.broadcast %53 : vector<8x1xf32> to vector<8x3xf32>
    %55 = arith.mulf %50, %54 : vector<8x3xf32>
    %56 = vector.extract_strided_slice %55 {offsets = [0, 0], sizes = [8, 1], strides = [1, 1]} : vector<8x3xf32> to vector<8x1xf32>
    %57 = vector.broadcast %56 : vector<8x1xf32> to vector<8x8xf32>
    %58 = arith.mulf %57, %11 : vector<8x8xf32>
    %59 = vector.extract_strided_slice %55 {offsets = [0, 1], sizes = [8, 1], strides = [1, 1]} : vector<8x3xf32> to vector<8x1xf32>
    %60 = vector.broadcast %59 : vector<8x1xf32> to vector<8x8xf32>
    %61 = arith.mulf %60, %23 : vector<8x8xf32>
    %62 = arith.addf %58, %61 : vector<8x8xf32>
    %63 = vector.extract_strided_slice %55 {offsets = [0, 2], sizes = [8, 1], strides = [1, 1]} : vector<8x3xf32> to vector<8x1xf32>
    %64 = vector.broadcast %63 : vector<8x1xf32> to vector<8x8xf32>
    %65 = arith.mulf %64, %34 : vector<8x8xf32>
    %66 = arith.addf %62, %65 : vector<8x8xf32>
    %cst_20 = arith.constant dense<0xFF800000> : vector<8xf32>
    %67 = vector.multi_reduction <maximumf>, %66, %cst_20 [1] : vector<8x8xf32> to vector<8xf32>
    %68 = vector.shape_cast %67 : vector<8xf32> to vector<8x1xf32>
    %69 = vector.broadcast %68 : vector<8x1xf32> to vector<8x8xf32>
    %70 = arith.subf %66, %69 : vector<8x8xf32>
    %71 = math.exp %70 : vector<8x8xf32>
    %cst_21 = arith.constant dense<0.000000e+00> : vector<8xf32>
    %72 = vector.multi_reduction <add>, %71, %cst_21 [1] : vector<8x8xf32> to vector<8xf32>
    %73 = vector.shape_cast %72 : vector<8xf32> to vector<8x1xf32>
    %74 = vector.broadcast %73 : vector<8x1xf32> to vector<8x8xf32>
    %75 = arith.divf %71, %74 : vector<8x8xf32>
    %76 = tpu.concatenate %66, %75, %55 in 1 : vector<8x8xf32>, vector<8x8xf32>, vector<8x3xf32> -> vector<8x19xf32>
    %c0_22 = arith.constant 0 : index
    %c0_23 = arith.constant 0 : index
    %77 = vector.load %arg3[%c0_22, %c0_23] : memref<8x19xf32, #tpu.memory_space<vmem>>, vector<8x19xf32>
    tpu.vector_store %arg3[%c0_22, %c0_23], %76 {strides = array<i32>} : memref<8x19xf32, #tpu.memory_space<vmem>>, vector<8x19xf32>,
    return
  }
  func.func @transform_0(%arg0: i32) -> (i32, i32) {
    %c0_i32 = arith.constant 0 : i32
    %c0_i32_0 = arith.constant 0 : i32
    return %arg0, %c0_i32 : i32, i32
  }
  func.func @transform_1(%arg0: i32) -> (i32, i32) {
    %c0_i32 = arith.constant 0 : i32
    %c0_i32_0 = arith.constant 0 : i32
    %c0_i32_1 = arith.constant 0 : i32
    return %c0_i32, %c0_i32_0 : i32, i32
  }
  func.func @transform_2(%arg0: i32) -> (i32, i32) {
    %c0_i32 = arith.constant 0 : i32
    %c0_i32_0 = arith.constant 0 : i32
    return %arg0, %c0_i32 : i32, i32
  }
}

</mosaic_0001>

<llo_original>
// kernel: rnn_agent_forward.1
$region0: #{rnn_agent_forward.1}
  #allocation0 [shape = 'u32[]', space=smem, size = 0x4, offset = 0x4, fixed_abs, tag = 'smem constant byte address 0x4 - core index']
  #allocation1 [shape = 'u32[144,128]{1,0:T(1,128)}', space=vmem, size = 0x12000, scoped, tag = 'internal scratch']
  %s0 = inlined_call_operand.vmem [shape: f32[8,16], index: 0, kind: input, shape index: {}]
  %s1 = inlined_call_operand.hbm [shape: f32[96,128], index: 1, kind: input, shape index: {}]
  %s2 = inlined_call_operand.vmem [shape: f32[8,19], index: 2, kind: output, shape index: {}]
  %s3 = sld [smem:[#allocation0]]
  $region22: #{rnn_agent_forward.1} parent=0
    _
  %s5 = ssub.s32 1, %s3
  %s6 = scalar_select 0, %s5, %s3
  $region1: #{rnn_agent_forward.1} parent=0
    #allocation2 [shape = 'u8[49152]{0}', space=vmem, size = 0xc000, scoped, tag = 'input window, operand 1, single buffered']
    #allocation3 [shape = 's32[1]{0}', space=sflag, size = 0x4, scoped, tag = 'scoped memory for rnn_agent_forward.1']
    %7 = vsyncpa [#allocation3], 0
    // Predicated region
    $region2: #{rnn_agent_forward.1} parent=1 // pred_check
      _
    $region3: #{rnn_agent_forward.1} parent=1 // pred_check_branch
      %9 = sbr.rel (0) target = $region5
    $region4: #{rnn_agent_forward.1} parent=1 // pred_region
      _
    $region5: #{rnn_agent_forward.1} parent=1 // pred_fallthru
      _
    // Predicated region
    $region6: #{rnn_agent_forward.1} parent=1 // pred_check
      _
    $region7: #{rnn_agent_forward.1} parent=1 // pred_check_branch
      %11 = sbr.rel (0) target = $region9
    $region8: #{rnn_agent_forward.1} parent=1 // pred_region
      %s13 = ssub.s32 1536, 1536
      %14 = vsyncadd [#allocation3], %s13
      %s15 = sshll.u32 [#allocation2], 4
      %s16 = int_to_ptr.vmem [resolvable:$true] %s15
      %21 = dma.hbm_to_vmem [thread:$0]  %s1, 1536, %s16, [#allocation3], 128, 128, 8
    $region9: #{rnn_agent_forward.1} parent=1 // pred_fallthru
      _
    // Predicated region
    $region10: #{rnn_agent_forward.1} parent=1 // pred_check
      _
    $region11: #{rnn_agent_forward.1} parent=1 // pred_check_branch
      %23 = sbr.rel (0) target = $region13
    $region12: #{rnn_agent_forward.1} parent=1 // pred_region
      %24 = dma.done [#allocation3], 1536
    $region13: #{rnn_agent_forward.1} parent=1 // pred_fallthru
      _
    %v25 = vld [vmem:[%s0] sm:$0xff]
    %v26 = vld [vmem:[#allocation2] sm:$0xff]
    %v27 = vld [vmem:[#allocation2 + $0x8] sm:$0xff]
    %v28 = vld [vmem:[#allocation2 + $0x10] sm:$0xff]
    %v29 = vld [vmem:[#allocation2 + $0x18] sm:$0xff]
    %v30 = vld [vmem:[#allocation2 + $0x20] sm:$0xff]
    %v31 = vld [vmem:[#allocation2 + $0x28] sm:$0xff]
    %v32 = vld [vmem:[#allocation2 + $0x30] sm:$0xff]
    %v33 = vld [vmem:[#allocation2 + $0x38] sm:$0xff]
    %v34 = vld [vmem:[#allocation2 + $0x40] sm:$0xff]
    %v35 = vld [vmem:[#allocation2 + $0x48] sm:$0xff]
    %v36 = vld [vmem:[#allocation2 + $0x50] sm:$0xff]
    %v37 = vld [vmem:[#allocation2 + $0x58] sm:$0x1]
    %v38 = vld [vmem:[#allocation2 + $0x59] sm:$0x1]
    %v39 = vld [vmem:[#allocation2 + $0x5a] sm:$0x1]
    %v40 = vlaneseq
    %v41 = vshrl.u32 %v40, 7
    %v42 = vsub.s32 0, %v41
    %v43 = vrot.slane %v37, %v42
    %vm44 = vcmask 130048
    %v46 = vsel %vm44, %v25, 0
    %48 = vmatprep.subr.mxu0 0.0
    %49 = vmatpush1.msra.mxu0 %v26
    %50 = vmatprep.subr.mxu0 0.0
    %51 = vmatpush1.msra.mxu0 %v27
    %52 = vmatprep.subr.mxu0 0.0
    %53 = vmatpush1.msra.mxu0 0.0
    %54 = vmatprep.subr.mxu0 0.0
    %55 = vmatpush1.msra.mxu0 0.0
    %56 = vmatprep.subr.mxu0 0.0
    %57 = vmatpush1.msra.mxu0 0.0
    %58 = vmatprep.subr.mxu0 0.0
    %59 = vmatpush1.msra.mxu0 0.0
    %60 = vmatprep.subr.mxu0 0.0
    %61 = vmatpush1.msra.mxu0 0.0
    %62 = vmatprep.subr.mxu0 0.0
    %63 = vmatpush1.msra.mxu0 0.0
    %64 = vmatprep.subr.mxu0 0.0
    %65 = vmatpush1.msra.mxu0 0.0
    %66 = vmatprep.subr.mxu0 0.0
    %67 = vmatpush1.msra.mxu0 0.0
    %68 = vmatprep.subr.mxu0 0.0
    %69 = vmatpush1.msra.mxu0 0.0
    %70 = vmatprep.subr.mxu0 0.0
    %71 = vmatpush1.msra.mxu0 0.0
    %72 = vmatprep.subr.mxu0 0.0
    %73 = vmatpush1.msra.mxu0 0.0
    %74 = vmatprep.subr.mxu0 0.0
    %75 = vmatpush1.msra.mxu0 0.0
    %76 = vmatprep.subr.mxu0 0.0
    %77 = vmatpush1.msra.mxu0 0.0
    %78 = vmatprep.subr.mxu0 0.0
    %79 = vmatpush1.msra.mxu0 0.0
    %80 = vmatprep.subr.mxu0 0.0
    %81 = vmatpush1.msra.mxu0 0.0
    %82 = vmatprep.subr.mxu0 0.0
    %83 = vmatpush1.msra.mxu0 0.0
    %84 = vmatprep.subr.mxu0 0.0
    %85 = vmatpush1.msra.mxu0 0.0
    %86 = vmatprep.subr.mxu0 0.0
    %87 = vmatpush1.msra.mxu0 0.0
    %88 = vmatprep.subr.mxu0 0.0
    %89 = vmatpush1.msra.mxu0 0.0
    %90 = vmatprep.subr.mxu0 0.0
    %91 = vmatpush1.msra.mxu0 0.0
    %92 = vmatprep.subr.mxu0 0.0
    %93 = vmatpush1.msra.mxu0 0.0
    %94 = vmatprep.subr.mxu0 0.0
    %95 = vmatpush1.msra.mxu0 0.0
    %96 = vmatprep.subr.mxu0 0.0
    %97 = vmatpush1.msra.mxu0 0.0
    %98 = vmatprep.subr.mxu0 0.0
    %99 = vmatpush1.msra.mxu0 0.0
    %100 = vmatprep.subr.mxu0 0.0
    %101 = vmatpush1.msra.mxu0 0.0
    %102 = vmatprep.subr.mxu0 0.0
    %103 = vmatpush1.msra.mxu0 0.0
    %104 = vmatprep.subr.mxu0 0.0
    %105 = vmatpush1.msra.mxu0 0.0
    %106 = vmatprep.subr.mxu0 0.0
    %107 = vmatpush1.msra.mxu0 0.0
    %108 = vmatprep.subr.mxu0 0.0
    %109 = vmatpush1.msra.mxu0 0.0
    %110 = vmatprep.subr.mxu0 0.0
    %111 = vmatpush1.msra.mxu0 0.0
    %112 = vmatprep.mubr.f32.mxu0 0.0
    %113 = vmatmul.mubr.f32.gmra.mrb[0].mxu0 %v46
    %v114 = vpop.f32.mrb[0].mxu0
    %v115 = vadd.f32 %v43, %v114
    %v116 = vpop.f32.mrb[0].mxu0
    %117 = vdwg.mxu0
    %119 = vrot.lane.b32.xlu0 %v115, 120
    %v120 = vpop.permute.xlu0 %119
    %vm121 = vcmask 261120
    %v122 = vsel %vm121, %v120, 0
    %124 = vmatprep.subr.mxu0 0.0
    %125 = vmatpush1.msra.mxu0 %v29
    %126 = vmatprep.subr.mxu0 0.0
    %127 = vmatpush1.msra.mxu0 %v30
    %128 = vmatprep.subr.mxu0 0.0
    %129 = vmatpush1.msra.mxu0 %v31
    %130 = vmatprep.subr.mxu0 0.0
    %131 = vmatpush1.msra.mxu0 %v32
    %132 = vmatprep.subr.mxu0 0.0
    %133 = vmatpush1.msra.mxu0 0.0
    %134 = vmatprep.subr.mxu0 0.0
    %135 = vmatpush1.msra.mxu0 0.0
    %136 = vmatprep.subr.mxu0 0.0
    %137 = vmatpush1.msra.mxu0 0.0
    %138 = vmatprep.subr.mxu0 0.0
    %139 = vmatpush1.msra.mxu0 0.0
    %140 = vmatprep.subr.mxu0 0.0
    %141 = vmatpush1.msra.mxu0 0.0
    %142 = vmatprep.subr.mxu0 0.0
    %143 = vmatpush1.msra.mxu0 0.0
    %144 = vmatprep.subr.mxu0 0.0
    %145 = vmatpush1.msra.mxu0 0.0
    %146 = vmatprep.subr.mxu0 0.0
    %147 = vmatpush1.msra.mxu0 0.0
    %148 = vmatprep.subr.mxu0 0.0
    %149 = vmatpush1.msra.mxu0 0.0
    %150 = vmatprep.subr.mxu0 0.0
    %151 = vmatpush1.msra.mxu0 0.0
    %152 = vmatprep.subr.mxu0 0.0
    %153 = vmatpush1.msra.mxu0 0.0
    %154 = vmatprep.subr.mxu0 0.0
    %155 = vmatpush1.msra.mxu0 0.0
    %156 = vmatprep.subr.mxu0 0.0
    %157 = vmatpush1.msra.mxu0 0.0
    %158 = vmatprep.subr.mxu0 0.0
    %159 = vmatpush1.msra.mxu0 0.0
    %160 = vmatprep.subr.mxu0 0.0
    %161 = vmatpush1.msra.mxu0 0.0
    %162 = vmatprep.subr.mxu0 0.0
    %163 = vmatpush1.msra.mxu0 0.0
    %164 = vmatprep.subr.mxu0 0.0
    %165 = vmatpush1.msra.mxu0 0.0
    %166 = vmatprep.subr.mxu0 0.0
    %167 = vmatpush1.msra.mxu0 0.0
    %168 = vmatprep.subr.mxu0 0.0
    %169 = vmatpush1.msra.mxu0 0.0
    %170 = vmatprep.subr.mxu0 0.0
    %171 = vmatpush1.msra.mxu0 0.0
    %172 = vmatprep.subr.mxu0 0.0
    %173 = vmatpush1.msra.mxu0 0.0
    %174 = vmatprep.subr.mxu0 0.0
    %175 = vmatpush1.msra.mxu0 0.0
    %176 = vmatprep.subr.mxu0 0.0
    %177 = vmatpush1.msra.mxu0 0.0
    %178 = vmatprep.subr.mxu0 0.0
    %179 = vmatpush1.msra.mxu0 0.0
    %180 = vmatprep.subr.mxu0 0.0
    %181 = vmatpush1.msra.mxu0 0.0
    %182 = vmatprep.subr.mxu0 0.0
    %183 = vmatpush1.msra.mxu0 0.0
    %184 = vmatprep.subr.mxu0 0.0
    %185 = vmatpush1.msra.mxu0 0.0
    %186 = vmatprep.subr.mxu0 0.0
    %187 = vmatpush1.msra.mxu0 0.0
    %188 = vmatprep.mubr.f32.mxu0 0.0
    %189 = vmatmul.mubr.f32.gmra.mrb[0].mxu0 %v122
    %v190 = vpop.f32.mrb[0].mxu0
    %v191 = vadd.f32 0.0, %v190
    %v192 = vpop.f32.mrb[0].mxu0
    %193 = vdwg.mxu0
    %vm194 = vcmask 64512
    %v195 = vsel %vm194, %v115, 0
    %197 = vmatprep.subr.mxu0 0.0
    %198 = vmatpush1.msra.mxu0 %v28
    %199 = vmatprep.subr.mxu0 0.0
    %200 = vmatpush1.msra.mxu0 0.0
    %201 = vmatprep.subr.mxu0 0.0
    %202 = vmatpush1.msra.mxu0 0.0
    %203 = vmatprep.subr.mxu0 0.0
    %204 = vmatpush1.msra.mxu0 0.0
    %205 = vmatprep.subr.mxu0 0.0
    %206 = vmatpush1.msra.mxu0 0.0
    %207 = vmatprep.subr.mxu0 0.0
    %208 = vmatpush1.msra.mxu0 0.0
    %209 = vmatprep.subr.mxu0 0.0
    %210 = vmatpush1.msra.mxu0 0.0
    %211 = vmatprep.subr.mxu0 0.0
    %212 = vmatpush1.msra.mxu0 0.0
    %213 = vmatprep.subr.mxu0 0.0
    %214 = vmatpush1.msra.mxu0 0.0
    %215 = vmatprep.subr.mxu0 0.0
    %216 = vmatpush1.msra.mxu0 0.0
    %217 = vmatprep.subr.mxu0 0.0
    %218 = vmatpush1.msra.mxu0 0.0
    %219 = vmatprep.subr.mxu0 0.0
    %220 = vmatpush1.msra.mxu0 0.0
    %221 = vmatprep.subr.mxu0 0.0
    %222 = vmatpush1.msra.mxu0 0.0
    %223 = vmatprep.subr.mxu0 0.0
    %224 = vmatpush1.msra.mxu0 0.0
    %225 = vmatprep.subr.mxu0 0.0
    %226 = vmatpush1.msra.mxu0 0.0
    %227 = vmatprep.subr.mxu0 0.0
    %228 = vmatpush1.msra.mxu0 0.0
    %229 = vmatprep.subr.mxu0 0.0
    %230 = vmatpush1.msra.mxu0 0.0
    %231 = vmatprep.subr.mxu0 0.0
    %232 = vmatpush1.msra.mxu0 0.0
    %233 = vmatprep.subr.mxu0 0.0
    %234 = vmatpush1.msra.mxu0 0.0
    %235 = vmatprep.subr.mxu0 0.0
    %236 = vmatpush1.msra.mxu0 0.0
    %237 = vmatprep.subr.mxu0 0.0
    %238 = vmatpush1.msra.mxu0 0.0
    %239 = vmatprep.subr.mxu0 0.0
    %240 = vmatpush1.msra.mxu0 0.0
    %241 = vmatprep.subr.mxu0 0.0
    %242 = vmatpush1.msra.mxu0 0.0
    %243 = vmatprep.subr.mxu0 0.0
    %244 = vmatpush1.msra.mxu0 0.0
    %245 = vmatprep.subr.mxu0 0.0
    %246 = vmatpush1.msra.mxu0 0.0
    %247 = vmatprep.subr.mxu0 0.0
    %248 = vmatpush1.msra.mxu0 0.0
    %249 = vmatprep.subr.mxu0 0.0
    %250 = vmatpush1.msra.mxu0 0.0
    %251 = vmatprep.subr.mxu0 0.0
    %252 = vmatpush1.msra.mxu0 0.0
    %253 = vmatprep.subr.mxu0 0.0
    %254 = vmatpush1.msra.mxu0 0.0
    %255 = vmatprep.subr.mxu0 0.0
    %256 = vmatpush1.msra.mxu0 0.0
    %257 = vmatprep.subr.mxu0 0.0
    %258 = vmatpush1.msra.mxu0 0.0
    %259 = vmatprep.subr.mxu0 0.0
    %260 = vmatpush1.msra.mxu0 0.0
    %261 = vmatprep.mubr.f32.mxu0 0.0
    %262 = vmatmul.mubr.f32.gmra.mrb[0].mxu0 %v195
    %v263 = vpop.f32.mrb[0].mxu0
    %v264 = vadd.f32 %v191, %v263
    %v265 = vpop.f32.mrb[0].mxu0
    %266 = vdwg.mxu0
    %v267 = vlaneseq
    %v268 = vshrl.u32 %v267, 7
    %v269 = vsub.s32 0, %v268
    %v270 = vrot.slane %v38, %v269
    %v271 = vadd.f32 %v264, %v270
    %v272 = vtanh.pop %v271
    %v273 = vlaneseq
    %v274 = vshrl.u32 %v273, 7
    %v275 = vsub.s32 0, %v274
    %v276 = vrot.slane %v39, %v275
    %v278 = vsel %vm121, %v272, 0
    %280 = vmatprep.subr.mxu0 0.0
    %281 = vmatpush1.msra.mxu0 %v33
    %282 = vmatprep.subr.mxu0 0.0
    %283 = vmatpush1.msra.mxu0 %v34
    %284 = vmatprep.subr.mxu0 0.0
    %285 = vmatpush1.msra.mxu0 %v35
    %286 = vmatprep.subr.mxu0 0.0
    %287 = vmatpush1.msra.mxu0 %v36
    %288 = vmatprep.subr.mxu0 0.0
    %289 = vmatpush1.msra.mxu0 0.0
    %290 = vmatprep.subr.mxu0 0.0
    %291 = vmatpush1.msra.mxu0 0.0
    %292 = vmatprep.subr.mxu0 0.0
    %293 = vmatpush1.msra.mxu0 0.0
    %294 = vmatprep.subr.mxu0 0.0
    %295 = vmatpush1.msra.mxu0 0.0
    %296 = vmatprep.subr.mxu0 0.0
    %297 = vmatpush1.msra.mxu0 0.0
    %298 = vmatprep.subr.mxu0 0.0
    %299 = vmatpush1.msra.mxu0 0.0
    %300 = vmatprep.subr.mxu0 0.0
    %301 = vmatpush1.msra.mxu0 0.0
    %302 = vmatprep.subr.mxu0 0.0
    %303 = vmatpush1.msra.mxu0 0.0
    %304 = vmatprep.subr.mxu0 0.0
    %305 = vmatpush1.msra.mxu0 0.0
    %306 = vmatprep.subr.mxu0 0.0
    %307 = vmatpush1.msra.mxu0 0.0
    %308 = vmatprep.subr.mxu0 0.0
    %309 = vmatpush1.msra.mxu0 0.0
    %310 = vmatprep.subr.mxu0 0.0
    %311 = vmatpush1.msra.mxu0 0.0
    %312 = vmatprep.subr.mxu0 0.0
    %313 = vmatpush1.msra.mxu0 0.0
    %314 = vmatprep.subr.mxu0 0.0
    %315 = vmatpush1.msra.mxu0 0.0
    %316 = vmatprep.subr.mxu0 0.0
    %317 = vmatpush1.msra.mxu0 0.0
    %318 = vmatprep.subr.mxu0 0.0
    %319 = vmatpush1.msra.mxu0 0.0
    %320 = vmatprep.subr.mxu0 0.0
    %321 = vmatpush1.msra.mxu0 0.0
    %322 = vmatprep.subr.mxu0 0.0
    %323 = vmatpush1.msra.mxu0 0.0
    %324 = vmatprep.subr.mxu0 0.0
    %325 = vmatpush1.msra.mxu0 0.0
    %326 = vmatprep.subr.mxu0 0.0
    %327 = vmatpush1.msra.mxu0 0.0
    %328 = vmatprep.subr.mxu0 0.0
    %329 = vmatpush1.msra.mxu0 0.0
    %330 = vmatprep.subr.mxu0 0.0
    %331 = vmatpush1.msra.mxu0 0.0
    %332 = vmatprep.subr.mxu0 0.0
    %333 = vmatpush1.msra.mxu0 0.0
    %334 = vmatprep.subr.mxu0 0.0
    %335 = vmatpush1.msra.mxu0 0.0
    %336 = vmatprep.subr.mxu0 0.0
    %337 = vmatpush1.msra.mxu0 0.0
    %338 = vmatprep.subr.mxu0 0.0
    %339 = vmatpush1.msra.mxu0 0.0
    %340 = vmatprep.subr.mxu0 0.0
    %341 = vmatpush1.msra.mxu0 0.0
    %342 = vmatprep.subr.mxu0 0.0
    %343 = vmatpush1.msra.mxu0 0.0
    %344 = vmatprep.mubr.f32.mxu0 0.0
    %345 = vmatmul.mubr.f32.gmra.mrb[0].mxu0 %v278
    %v346 = vpop.f32.mrb[0].mxu0
    %v347 = vadd.f32 %v276, %v346
    %v348 = vpop.f32.mrb[0].mxu0
    %349 = vdwg.mxu0
    %350 = vmatprep.subr.mxu0 0.0
    %351 = vmatpush1.msra.mxu0 %v29
    %352 = vmatprep.subr.mxu0 0.0
    %353 = vmatpush1.msra.mxu0 %v30
    %354 = vmatprep.subr.mxu0 0.0
    %355 = vmatpush1.msra.mxu0 %v31
    %356 = vmatprep.subr.mxu0 0.0
    %357 = vmatpush1.msra.mxu0 %v32
    %358 = vmatprep.subr.mxu0 0.0
    %359 = vmatpush1.msra.mxu0 0.0
    %360 = vmatprep.subr.mxu0 0.0
    %361 = vmatpush1.msra.mxu0 0.0
    %362 = vmatprep.subr.mxu0 0.0
    %363 = vmatpush1.msra.mxu0 0.0
    %364 = vmatprep.subr.mxu0 0.0
    %365 = vmatpush1.msra.mxu0 0.0
    %366 = vmatprep.subr.mxu0 0.0
    %367 = vmatpush1.msra.mxu0 0.0
    %368 = vmatprep.subr.mxu0 0.0
    %369 = vmatpush1.msra.mxu0 0.0
    %370 = vmatprep.subr.mxu0 0.0
    %371 = vmatpush1.msra.mxu0 0.0
    %372 = vmatprep.subr.mxu0 0.0
    %373 = vmatpush1.msra.mxu0 0.0
    %374 = vmatprep.subr.mxu0 0.0
    %375 = vmatpush1.msra.mxu0 0.0
    %376 = vmatprep.subr.mxu0 0.0
    %377 = vmatpush1.msra.mxu0 0.0
    %378 = vmatprep.subr.mxu0 0.0
    %379 = vmatpush1.msra.mxu0 0.0
    %380 = vmatprep.subr.mxu0 0.0
    %381 = vmatpush1.msra.mxu0 0.0
    %382 = vmatprep.subr.mxu0 0.0
    %383 = vmatpush1.msra.mxu0 0.0
    %384 = vmatprep.subr.mxu0 0.0
    %385 = vmatpush1.msra.mxu0 0.0
    %386 = vmatprep.subr.mxu0 0.0
    %387 = vmatpush1.msra.mxu0 0.0
    %388 = vmatprep.subr.mxu0 0.0
    %389 = vmatpush1.msra.mxu0 0.0
    %390 = vmatprep.subr.mxu0 0.0
    %391 = vmatpush1.msra.mxu0 0.0
    %392 = vmatprep.subr.mxu0 0.0
    %393 = vmatpush1.msra.mxu0 0.0
    %394 = vmatprep.subr.mxu0 0.0
    %395 = vmatpush1.msra.mxu0 0.0
    %396 = vmatprep.subr.mxu0 0.0
    %397 = vmatpush1.msra.mxu0 0.0
    %398 = vmatprep.subr.mxu0 0.0
    %399 = vmatpush1.msra.mxu0 0.0
    %400 = vmatprep.subr.mxu0 0.0
    %401 = vmatpush1.msra.mxu0 0.0
    %402 = vmatprep.subr.mxu0 0.0
    %403 = vmatpush1.msra.mxu0 0.0
    %404 = vmatprep.subr.mxu0 0.0
    %405 = vmatpush1.msra.mxu0 0.0
    %406 = vmatprep.subr.mxu0 0.0
    %407 = vmatpush1.msra.mxu0 0.0
    %408 = vmatprep.subr.mxu0 0.0
    %409 = vmatpush1.msra.mxu0 0.0
    %410 = vmatprep.subr.mxu0 0.0
    %411 = vmatpush1.msra.mxu0 0.0
    %412 = vmatprep.subr.mxu0 0.0
    %413 = vmatpush1.msra.mxu0 0.0
    %414 = vmatprep.mubr.f32.mxu0 0.0
    %415 = vmatmul.mubr.f32.gmra.mrb[0].mxu0 %v278
    %v416 = vpop.f32.mrb[0].mxu0
    %v417 = vadd.f32 0.0, %v416
    %v418 = vpop.f32.mrb[0].mxu0
    %419 = vdwg.mxu0
    %v421 = vsel %vm194, %v347, 0
    %423 = vmatprep.subr.mxu0 0.0
    %424 = vmatpush1.msra.mxu0 %v28
    %425 = vmatprep.subr.mxu0 0.0
    %426 = vmatpush1.msra.mxu0 0.0
    %427 = vmatprep.subr.mxu0 0.0
    %428 = vmatpush1.msra.mxu0 0.0
    %429 = vmatprep.subr.mxu0 0.0
    %430 = vmatpush1.msra.mxu0 0.0
    %431 = vmatprep.subr.mxu0 0.0
    %432 = vmatpush1.msra.mxu0 0.0
    %433 = vmatprep.subr.mxu0 0.0
    %434 = vmatpush1.msra.mxu0 0.0
    %435 = vmatprep.subr.mxu0 0.0
    %436 = vmatpush1.msra.mxu0 0.0
    %437 = vmatprep.subr.mxu0 0.0
    %438 = vmatpush1.msra.mxu0 0.0
    %439 = vmatprep.subr.mxu0 0.0
    %440 = vmatpush1.msra.mxu0 0.0
    %441 = vmatprep.subr.mxu0 0.0
    %442 = vmatpush1.msra.mxu0 0.0
    %443 = vmatprep.subr.mxu0 0.0
    %444 = vmatpush1.msra.mxu0 0.0
    %445 = vmatprep.subr.mxu0 0.0
    %446 = vmatpush1.msra.mxu0 0.0
    %447 = vmatprep.subr.mxu0 0.0
    %448 = vmatpush1.msra.mxu0 0.0
    %449 = vmatprep.subr.mxu0 0.0
    %450 = vmatpush1.msra.mxu0 0.0
    %451 = vmatprep.subr.mxu0 0.0
    %452 = vmatpush1.msra.mxu0 0.0
    %453 = vmatprep.subr.mxu0 0.0
    %454 = vmatpush1.msra.mxu0 0.0
    %455 = vmatprep.subr.mxu0 0.0
    %456 = vmatpush1.msra.mxu0 0.0
    %457 = vmatprep.subr.mxu0 0.0
    %458 = vmatpush1.msra.mxu0 0.0
    %459 = vmatprep.subr.mxu0 0.0
    %460 = vmatpush1.msra.mxu0 0.0
    %461 = vmatprep.subr.mxu0 0.0
    %462 = vmatpush1.msra.mxu0 0.0
    %463 = vmatprep.subr.mxu0 0.0
    %464 = vmatpush1.msra.mxu0 0.0
    %465 = vmatprep.subr.mxu0 0.0
    %466 = vmatpush1.msra.mxu0 0.0
    %467 = vmatprep.subr.mxu0 0.0
    %468 = vmatpush1.msra.mxu0 0.0
    %469 = vmatprep.subr.mxu0 0.0
    %470 = vmatpush1.msra.mxu0 0.0
    %471 = vmatprep.subr.mxu0 0.0
    %472 = vmatpush1.msra.mxu0 0.0
    %473 = vmatprep.subr.mxu0 0.0
    %474 = vmatpush1.msra.mxu0 0.0
    %475 = vmatprep.subr.mxu0 0.0
    %476 = vmatpush1.msra.mxu0 0.0
    %477 = vmatprep.subr.mxu0 0.0
    %478 = vmatpush1.msra.mxu0 0.0
    %479 = vmatprep.subr.mxu0 0.0
    %480 = vmatpush1.msra.mxu0 0.0
    %481 = vmatprep.subr.mxu0 0.0
    %482 = vmatpush1.msra.mxu0 0.0
    %483 = vmatprep.subr.mxu0 0.0
    %484 = vmatpush1.msra.mxu0 0.0
    %485 = vmatprep.subr.mxu0 0.0
    %486 = vmatpush1.msra.mxu0 0.0
    %487 = vmatprep.mubr.f32.mxu0 0.0
    %488 = vmatmul.mubr.f32.gmra.mrb[0].mxu0 %v421
    %v489 = vpop.f32.mrb[0].mxu0
    %v490 = vadd.f32 %v417, %v489
    %v491 = vpop.f32.mrb[0].mxu0
    %492 = vdwg.mxu0
    %v493 = vadd.f32 %v490, %v270
    %v494 = vtanh.pop %v493
    %v496 = vsel %vm121, %v494, 0
    %498 = vmatprep.subr.mxu0 0.0
    %499 = vmatpush1.msra.mxu0 %v33
    %500 = vmatprep.subr.mxu0 0.0
    %501 = vmatpush1.msra.mxu0 %v34
    %502 = vmatprep.subr.mxu0 0.0
    %503 = vmatpush1.msra.mxu0 %v35
    %504 = vmatprep.subr.mxu0 0.0
    %505 = vmatpush1.msra.mxu0 %v36
    %506 = vmatprep.subr.mxu0 0.0
    %507 = vmatpush1.msra.mxu0 0.0
    %508 = vmatprep.subr.mxu0 0.0
    %509 = vmatpush1.msra.mxu0 0.0
    %510 = vmatprep.subr.mxu0 0.0
    %511 = vmatpush1.msra.mxu0 0.0
    %512 = vmatprep.subr.mxu0 0.0
    %513 = vmatpush1.msra.mxu0 0.0
    %514 = vmatprep.subr.mxu0 0.0
    %515 = vmatpush1.msra.mxu0 0.0
    %516 = vmatprep.subr.mxu0 0.0
    %517 = vmatpush1.msra.mxu0 0.0
    %518 = vmatprep.subr.mxu0 0.0
    %519 = vmatpush1.msra.mxu0 0.0
    %520 = vmatprep.subr.mxu0 0.0
    %521 = vmatpush1.msra.mxu0 0.0
    %522 = vmatprep.subr.mxu0 0.0
    %523 = vmatpush1.msra.mxu0 0.0
    %524 = vmatprep.subr.mxu0 0.0
    %525 = vmatpush1.msra.mxu0 0.0
    %526 = vmatprep.subr.mxu0 0.0
    %527 = vmatpush1.msra.mxu0 0.0
    %528 = vmatprep.subr.mxu0 0.0
    %529 = vmatpush1.msra.mxu0 0.0
    %530 = vmatprep.subr.mxu0 0.0
    %531 = vmatpush1.msra.mxu0 0.0
    %532 = vmatprep.subr.mxu0 0.0
    %533 = vmatpush1.msra.mxu0 0.0
    %534 = vmatprep.subr.mxu0 0.0
    %535 = vmatpush1.msra.mxu0 0.0
    %536 = vmatprep.subr.mxu0 0.0
    %537 = vmatpush1.msra.mxu0 0.0
    %538 = vmatprep.subr.mxu0 0.0
    %539 = vmatpush1.msra.mxu0 0.0
    %540 = vmatprep.subr.mxu0 0.0
    %541 = vmatpush1.msra.mxu0 0.0
    %542 = vmatprep.subr.mxu0 0.0
    %543 = vmatpush1.msra.mxu0 0.0
    %544 = vmatprep.subr.mxu0 0.0
    %545 = vmatpush1.msra.mxu0 0.0
    %546 = vmatprep.subr.mxu0 0.0
    %547 = vmatpush1.msra.mxu0 0.0
    %548 = vmatprep.subr.mxu0 0.0
    %549 = vmatpush1.msra.mxu0 0.0
    %550 = vmatprep.subr.mxu0 0.0
    %551 = vmatpush1.msra.mxu0 0.0
    %552 = vmatprep.subr.mxu0 0.0
    %553 = vmatpush1.msra.mxu0 0.0
    %554 = vmatprep.subr.mxu0 0.0
    %555 = vmatpush1.msra.mxu0 0.0
    %556 = vmatprep.subr.mxu0 0.0
    %557 = vmatpush1.msra.mxu0 0.0
    %558 = vmatprep.subr.mxu0 0.0
    %559 = vmatpush1.msra.mxu0 0.0
    %560 = vmatprep.subr.mxu0 0.0
    %561 = vmatpush1.msra.mxu0 0.0
    %562 = vmatprep.mubr.f32.mxu0 0.0
    %563 = vmatmul.mubr.f32.gmra.mrb[0].mxu0 %v496
    %v564 = vpop.f32.mrb[0].mxu0
    %v565 = vadd.f32 %v276, %v564
    %v566 = vpop.f32.mrb[0].mxu0
    %567 = vdwg.mxu0
    %568 = vmatprep.subr.mxu0 0.0
    %569 = vmatpush1.msra.mxu0 %v29
    %570 = vmatprep.subr.mxu0 0.0
    %571 = vmatpush1.msra.mxu0 %v30
    %572 = vmatprep.subr.mxu0 0.0
    %573 = vmatpush1.msra.mxu0 %v31
    %574 = vmatprep.subr.mxu0 0.0
    %575 = vmatpush1.msra.mxu0 %v32
    %576 = vmatprep.subr.mxu0 0.0
    %577 = vmatpush1.msra.mxu0 0.0
    %578 = vmatprep.subr.mxu0 0.0
    %579 = vmatpush1.msra.mxu0 0.0
    %580 = vmatprep.subr.mxu0 0.0
    %581 = vmatpush1.msra.mxu0 0.0
    %582 = vmatprep.subr.mxu0 0.0
    %583 = vmatpush1.msra.mxu0 0.0
    %584 = vmatprep.subr.mxu0 0.0
    %585 = vmatpush1.msra.mxu0 0.0
    %586 = vmatprep.subr.mxu0 0.0
    %587 = vmatpush1.msra.mxu0 0.0
    %588 = vmatprep.subr.mxu0 0.0
    %589 = vmatpush1.msra.mxu0 0.0
    %590 = vmatprep.subr.mxu0 0.0
    %591 = vmatpush1.msra.mxu0 0.0
    %592 = vmatprep.subr.mxu0 0.0
    %593 = vmatpush1.msra.mxu0 0.0
    %594 = vmatprep.subr.mxu0 0.0
    %595 = vmatpush1.msra.mxu0 0.0
    %596 = vmatprep.subr.mxu0 0.0
    %597 = vmatpush1.msra.mxu0 0.0
    %598 = vmatprep.subr.mxu0 0.0
    %599 = vmatpush1.msra.mxu0 0.0
    %600 = vmatprep.subr.mxu0 0.0
    %601 = vmatpush1.msra.mxu0 0.0
    %602 = vmatprep.subr.mxu0 0.0
    %603 = vmatpush1.msra.mxu0 0.0
    %604 = vmatprep.subr.mxu0 0.0
    %605 = vmatpush1.msra.mxu0 0.0
    %606 = vmatprep.subr.mxu0 0.0
    %607 = vmatpush1.msra.mxu0 0.0
    %608 = vmatprep.subr.mxu0 0.0
    %609 = vmatpush1.msra.mxu0 0.0
    %610 = vmatprep.subr.mxu0 0.0
    %611 = vmatpush1.msra.mxu0 0.0
    %612 = vmatprep.subr.mxu0 0.0
    %613 = vmatpush1.msra.mxu0 0.0
    %614 = vmatprep.subr.mxu0 0.0
    %615 = vmatpush1.msra.mxu0 0.0
    %616 = vmatprep.subr.mxu0 0.0
    %617 = vmatpush1.msra.mxu0 0.0
    %618 = vmatprep.subr.mxu0 0.0
    %619 = vmatpush1.msra.mxu0 0.0
    %620 = vmatprep.subr.mxu0 0.0
    %621 = vmatpush1.msra.mxu0 0.0
    %622 = vmatprep.subr.mxu0 0.0
    %623 = vmatpush1.msra.mxu0 0.0
    %624 = vmatprep.subr.mxu0 0.0
    %625 = vmatpush1.msra.mxu0 0.0
    %626 = vmatprep.subr.mxu0 0.0
    %627 = vmatpush1.msra.mxu0 0.0
    %628 = vmatprep.subr.mxu0 0.0
    %629 = vmatpush1.msra.mxu0 0.0
    %630 = vmatprep.subr.mxu0 0.0
    %631 = vmatpush1.msra.mxu0 0.0
    %632 = vmatprep.mubr.f32.mxu0 0.0
    %633 = vmatmul.mubr.f32.gmra.mrb[0].mxu0 %v496
    %v634 = vpop.f32.mrb[0].mxu0
    %v635 = vadd.f32 0.0, %v634
    %v636 = vpop.f32.mrb[0].mxu0
    %637 = vdwg.mxu0
    %v639 = vsel %vm194, %v565, 0
    %641 = vmatprep.subr.mxu0 0.0
    %642 = vmatpush1.msra.mxu0 %v28
    %643 = vmatprep.subr.mxu0 0.0
    %644 = vmatpush1.msra.mxu0 0.0
    %645 = vmatprep.subr.mxu0 0.0
    %646 = vmatpush1.msra.mxu0 0.0
    %647 = vmatprep.subr.mxu0 0.0
    %648 = vmatpush1.msra.mxu0 0.0
    %649 = vmatprep.subr.mxu0 0.0
    %650 = vmatpush1.msra.mxu0 0.0
    %651 = vmatprep.subr.mxu0 0.0
    %652 = vmatpush1.msra.mxu0 0.0
    %653 = vmatprep.subr.mxu0 0.0
    %654 = vmatpush1.msra.mxu0 0.0
    %655 = vmatprep.subr.mxu0 0.0
    %656 = vmatpush1.msra.mxu0 0.0
    %657 = vmatprep.subr.mxu0 0.0
    %658 = vmatpush1.msra.mxu0 0.0
    %659 = vmatprep.subr.mxu0 0.0
    %660 = vmatpush1.msra.mxu0 0.0
    %661 = vmatprep.subr.mxu0 0.0
    %662 = vmatpush1.msra.mxu0 0.0
    %663 = vmatprep.subr.mxu0 0.0
    %664 = vmatpush1.msra.mxu0 0.0
    %665 = vmatprep.subr.mxu0 0.0
    %666 = vmatpush1.msra.mxu0 0.0
    %667 = vmatprep.subr.mxu0 0.0
    %668 = vmatpush1.msra.mxu0 0.0
    %669 = vmatprep.subr.mxu0 0.0
    %670 = vmatpush1.msra.mxu0 0.0
    %671 = vmatprep.subr.mxu0 0.0
    %672 = vmatpush1.msra.mxu0 0.0
    %673 = vmatprep.subr.mxu0 0.0
    %674 = vmatpush1.msra.mxu0 0.0
    %675 = vmatprep.subr.mxu0 0.0
    %676 = vmatpush1.msra.mxu0 0.0
    %677 = vmatprep.subr.mxu0 0.0
    %678 = vmatpush1.msra.mxu0 0.0
    %679 = vmatprep.subr.mxu0 0.0
    %680 = vmatpush1.msra.mxu0 0.0
    %681 = vmatprep.subr.mxu0 0.0
    %682 = vmatpush1.msra.mxu0 0.0
    %683 = vmatprep.subr.mxu0 0.0
    %684 = vmatpush1.msra.mxu0 0.0
    %685 = vmatprep.subr.mxu0 0.0
    %686 = vmatpush1.msra.mxu0 0.0
    %687 = vmatprep.subr.mxu0 0.0
    %688 = vmatpush1.msra.mxu0 0.0
    %689 = vmatprep.subr.mxu0 0.0
    %690 = vmatpush1.msra.mxu0 0.0
    %691 = vmatprep.subr.mxu0 0.0
    %692 = vmatpush1.msra.mxu0 0.0
    %693 = vmatprep.subr.mxu0 0.0
    %694 = vmatpush1.msra.mxu0 0.0
    %695 = vmatprep.subr.mxu0 0.0
    %696 = vmatpush1.msra.mxu0 0.0
    %697 = vmatprep.subr.mxu0 0.0
    %698 = vmatpush1.msra.mxu0 0.0
    %699 = vmatprep.subr.mxu0 0.0
    %700 = vmatpush1.msra.mxu0 0.0
    %701 = vmatprep.subr.mxu0 0.0
    %702 = vmatpush1.msra.mxu0 0.0
    %703 = vmatprep.subr.mxu0 0.0
    %704 = vmatpush1.msra.mxu0 0.0
    %705 = vmatprep.mubr.f32.mxu0 0.0
    %706 = vmatmul.mubr.f32.gmra.mrb[0].mxu0 %v639
    %v707 = vpop.f32.mrb[0].mxu0
    %v708 = vadd.f32 %v635, %v707
    %v709 = vpop.f32.mrb[0].mxu0
    %710 = vdwg.mxu0
    %v711 = vadd.f32 %v708, %v270
    %v712 = vtanh.pop %v711
    %v714 = vsel %vm121, %v712, 0
    %716 = vmatprep.subr.mxu0 0.0
    %717 = vmatpush1.msra.mxu0 %v33
    %718 = vmatprep.subr.mxu0 0.0
    %719 = vmatpush1.msra.mxu0 %v34
    %720 = vmatprep.subr.mxu0 0.0
    %721 = vmatpush1.msra.mxu0 %v35
    %722 = vmatprep.subr.mxu0 0.0
    %723 = vmatpush1.msra.mxu0 %v36
    %724 = vmatprep.subr.mxu0 0.0
    %725 = vmatpush1.msra.mxu0 0.0
    %726 = vmatprep.subr.mxu0 0.0
    %727 = vmatpush1.msra.mxu0 0.0
    %728 = vmatprep.subr.mxu0 0.0
    %729 = vmatpush1.msra.mxu0 0.0
    %730 = vmatprep.subr.mxu0 0.0
    %731 = vmatpush1.msra.mxu0 0.0
    %732 = vmatprep.subr.mxu0 0.0
    %733 = vmatpush1.msra.mxu0 0.0
    %734 = vmatprep.subr.mxu0 0.0
    %735 = vmatpush1.msra.mxu0 0.0
    %736 = vmatprep.subr.mxu0 0.0
    %737 = vmatpush1.msra.mxu0 0.0
    %738 = vmatprep.subr.mxu0 0.0
    %739 = vmatpush1.msra.mxu0 0.0
    %740 = vmatprep.subr.mxu0 0.0
    %741 = vmatpush1.msra.mxu0 0.0
    %742 = vmatprep.subr.mxu0 0.0
    %743 = vmatpush1.msra.mxu0 0.0
    %744 = vmatprep.subr.mxu0 0.0
    %745 = vmatpush1.msra.mxu0 0.0
    %746 = vmatprep.subr.mxu0 0.0
    %747 = vmatpush1.msra.mxu0 0.0
    %748 = vmatprep.subr.mxu0 0.0
    %749 = vmatpush1.msra.mxu0 0.0
    %750 = vmatprep.subr.mxu0 0.0
    %751 = vmatpush1.msra.mxu0 0.0
    %752 = vmatprep.subr.mxu0 0.0
    %753 = vmatpush1.msra.mxu0 0.0
    %754 = vmatprep.subr.mxu0 0.0
    %755 = vmatpush1.msra.mxu0 0.0
    %756 = vmatprep.subr.mxu0 0.0
    %757 = vmatpush1.msra.mxu0 0.0
    %758 = vmatprep.subr.mxu0 0.0
    %759 = vmatpush1.msra.mxu0 0.0
    %760 = vmatprep.subr.mxu0 0.0
    %761 = vmatpush1.msra.mxu0 0.0
    %762 = vmatprep.subr.mxu0 0.0
    %763 = vmatpush1.msra.mxu0 0.0
    %764 = vmatprep.subr.mxu0 0.0
    %765 = vmatpush1.msra.mxu0 0.0
    %766 = vmatprep.subr.mxu0 0.0
    %767 = vmatpush1.msra.mxu0 0.0
    %768 = vmatprep.subr.mxu0 0.0
    %769 = vmatpush1.msra.mxu0 0.0
    %770 = vmatprep.subr.mxu0 0.0
    %771 = vmatpush1.msra.mxu0 0.0
    %772 = vmatprep.subr.mxu0 0.0
    %773 = vmatpush1.msra.mxu0 0.0
    %774 = vmatprep.subr.mxu0 0.0
    %775 = vmatpush1.msra.mxu0 0.0
    %776 = vmatprep.subr.mxu0 0.0
    %777 = vmatpush1.msra.mxu0 0.0
    %778 = vmatprep.subr.mxu0 0.0
    %779 = vmatpush1.msra.mxu0 0.0
    %780 = vmatprep.mubr.f32.mxu0 0.0
    %781 = vmatmul.mubr.f32.gmra.mrb[0].mxu0 %v714
    %v782 = vpop.f32.mrb[0].mxu0
    %v783 = vadd.f32 %v276, %v782
    %v784 = vpop.f32.mrb[0].mxu0
    %785 = vdwg.mxu0
    %786 = vrot.lane.b32.xlu0 %v347, 120
    %v787 = vpop.permute.xlu0 %786
    %789 = vrot.lane.b32.xlu0 %v565, 121
    %v790 = vpop.permute.xlu0 %789
    %793 = vrot.lane.b32.xlu0 %v783, 122
    %v794 = vpop.permute.xlu0 %793
    %vm796 = vcmask 7168
    %v797 = vsel %vm796, %v787, %v790
    %vm798 = vcmask 15360
    %v799 = vsel %vm798, %v797, %v794
    %vm800 = vcmask 23552
    %v801 = vsel %vm800, %v799, -inf
    %802 = vmax.xlane.f32.xlu0 %v801
    %v803 = vpop.xlane.xlu0 %802
    %v804 = vsub.f32 %v799, %v803
    %v805 = vmul.f32 %v804, 1.442695
    %v806 = vpow.pop %v805
    %v807 = vsel %vm800, %v806, 0.0
    %808 = vadd.xlane.f32.xlu0 %v807
    %v809 = vpop.xlane.xlu0 %808
    %v810 = vrcp.pop %v809
    %v811 = vmul.f32 %v806, %v810
    %813 = vset.pattern.permute.xlu0 0
    %814 = vperm.xlu0 %813, %v811
    %v815 = vpop.permute.xlu0 %814
    %v817 = vmul.f32 %v815, %v115
    %818 = vset.pattern.permute.xlu0 1
    %819 = vperm.xlu0 %818, %v811
    %v820 = vpop.permute.xlu0 %819
    %v822 = vmul.f32 %v820, %v347
    %v823 = vadd.f32 %v817, %v822
    %824 = vset.pattern.permute.xlu0 2
    %825 = vperm.xlu0 %824, %v811
    %v826 = vpop.permute.xlu0 %825
    %v828 = vmul.f32 %v826, %v565
    %v829 = vadd.f32 %v823, %v828
    %v830 = vsel %vm194, %v829, -inf
    %831 = vmax.xlane.f32.xlu0 %v830
    %v832 = vpop.xlane.xlu0 %831
    %v833 = vsub.f32 %v829, %v832
    %v834 = vmul.f32 %v833, 1.442695
    %v835 = vpow.pop %v834
    %v836 = vsel %vm194, %v835, 0.0
    %837 = vadd.xlane.f32.xlu0 %v836
    %v838 = vpop.xlane.xlu0 %837
    %v839 = vrcp.pop %v838
    %v840 = vmul.f32 %v835, %v839
    %842 = vrot.lane.b32.xlu0 %v840, 8
    %v843 = vpop.permute.xlu0 %842
    %845 = vrot.lane.b32.xlu0 %v811, 16
    %v846 = vpop.permute.xlu0 %845
    %v848 = vsel %vm194, %v829, %v843
    %v849 = vsel %vm44, %v848, %v846
    %vm850 = vcmask 154624
    %851 = vst.msk [vmem:[%s2] sm:$0xff] %vm850, %v849
    // Predicated region
    $region14: #{rnn_agent_forward.1} parent=1 // pred_check
      _
    $region15: #{rnn_agent_forward.1} parent=1 // pred_check_branch
      %853 = sbr.rel (0) target = $region17
    $region16: #{rnn_agent_forward.1} parent=1 // pred_region
      _
    $region17: #{rnn_agent_forward.1} parent=1 // pred_fallthru
      _
    // Predicated region
    $region18: #{rnn_agent_forward.1} parent=1 // pred_check
      _
    $region19: #{rnn_agent_forward.1} parent=1 // pred_check_branch
      %855 = sbr.rel (0) target = $region21
    $region20: #{rnn_agent_forward.1} parent=1 // pred_region
      _
    $region21: #{rnn_agent_forward.1} parent=1 // pred_fallthru
      _
    %856 = vsyncpa [#allocation3], 1

</llo_original>
